<compile_context>
chip_gen: v6e
topology: v6e:2x2x1
jax: 0.10.0
libtpu: 0.0.40
codegen_flags: <defaults>
</compile_context>

<pallas_src>
import functools

import jax
import jax.numpy as jnp
from jax.experimental import pallas as pl
from jax.experimental.pallas import tpu as pltpu

LANE = 128
SUBLANE = 8


# ----------------------------------------------------------------------------
# Fused kernel: node-layer stack + mean-pool + 3-layer readout MLP
# ----------------------------------------------------------------------------
def _fused_mlpnet_kernel(h_ref, w_ref, b_ref, pool_ref, out_ref, *,
                         n_node_layers, n_total_layers):
    """Whole MLPNet forward in one kernel.

    h_ref    : [n_nodes_pad, 128]           f32  node features (lane-padded)
    w_ref    : [n_total_layers, 128, 128]   bf16 stacked weights (BN folded)
    b_ref    : [8, 128]                     f32  stacked biases (row i = layer i)
    pool_ref : [n_graphs_pad, n_nodes_pad]  f32  mean_nodes pooling matrix
    out_ref  : [n_graphs_pad, 128]          f32  padded logits
    """
    h = h_ref[...]

    # Node MLP stack (Linear -> [folded BN] -> ReLU). Activations stay in
    # VMEM / vregs; bf16 operands, f32 accumulate, f32 elementwise.
    for i in range(n_node_layers):
        h = jnp.dot(h.astype(jnp.bfloat16), w_ref[i],
                    preferred_element_type=jnp.float32) + b_ref[i]
        h = jnp.maximum(h, 0.0)

    # mean_nodes readout: hg = M @ h  (M rows are 1/|V_g| indicators).
    hg = jnp.dot(pool_ref[...].astype(jnp.bfloat16), h.astype(jnp.bfloat16),
                 preferred_element_type=jnp.float32)

    # Readout MLP: Linear -> ReLU -> Linear -> ReLU -> Linear.
    x = hg
    for i in range(n_node_layers, n_total_layers - 1):
        x = jnp.dot(x.astype(jnp.bfloat16), w_ref[i],
                    preferred_element_type=jnp.float32) + b_ref[i]
        x = jnp.maximum(x, 0.0)
    last = n_total_layers - 1
    out_ref[...] = jnp.dot(x.astype(jnp.bfloat16), w_ref[last],
                           preferred_element_type=jnp.float32) + b_ref[last]


def mlpnet_forward(h_pad, w_stack, b_stack, pool_pad, n_graphs, n_classes,
                   n_node_layers):
    """Single fused pallas_call; returns logits [n_graphs, n_classes]."""
    n_total = w_stack.shape[0]
    n_g_pad = pool_pad.shape[0]
    n_nodes_pad = h_pad.shape[0]
    out_pad = w_stack.shape[2]

    # Advisory cost hint for XLA's scheduler.
    flops = (n_node_layers * 2 * n_nodes_pad * LANE * LANE        # node matmuls
             + 2 * n_g_pad * n_nodes_pad * LANE                   # pooling
             + (n_total - n_node_layers) * 2 * n_g_pad * LANE * LANE)  # readout
    bytes_accessed = (h_pad.size * 4 + w_stack.size * 2 + b_stack.size * 4
                      + pool_pad.size * 4 + n_g_pad * out_pad * 4)

    kern = functools.partial(_fused_mlpnet_kernel,
                             n_node_layers=n_node_layers,
                             n_total_layers=n_total)
    vmem_spec = pl.BlockSpec(memory_space=pltpu.MemorySpace.VMEM)
    out = pl.pallas_call(
        kern,
        out_shape=jax.ShapeDtypeStruct((n_g_pad, out_pad), jnp.float32),
        in_specs=[vmem_spec] * 4,
        out_specs=vmem_spec,
        cost_estimate=pl.CostEstimate(flops=int(flops), transcendentals=0,
                                      bytes_accessed=int(bytes_accessed)),
    )(h_pad, w_stack, b_stack, pool_pad)
    return out[:n_graphs, :n_classes]


# ----------------------------------------------------------------------------
# Parameter construction (deterministic, PyTorch-style uniform init),
# BN folding, lane padding and operand stacking.
# ----------------------------------------------------------------------------
def _round_up(x, m):
    return (x + m - 1) // m * m


def _pad_to(a, shape):
    out = jnp.zeros(shape, a.dtype)
    return out.at[tuple(slice(0, s) for s in a.shape)].set(a)


def init_linear(key, indim, outdim):
    k1, k2 = jax.random.split(key)
    bound = 1.0 / (indim ** 0.5)
    w = jax.random.uniform(k1, (indim, outdim), jnp.float32, -bound, bound)
    b = jax.random.uniform(k2, (1, outdim), jnp.float32, -bound, bound)
    return w, b


def init_bn(key, dim):
    k1, k2, k3 = jax.random.split(key, 3)
    gamma = 1.0 + 0.1 * jax.random.normal(k1, (1, dim), jnp.float32)
    beta = 0.1 * jax.random.normal(k2, (1, dim), jnp.float32)
    mean = 0.1 * jax.random.normal(k3, (1, dim), jnp.float32)
    var = jnp.ones((1, dim), jnp.float32)
    return gamma, beta, mean, var


def fold_bn(w, b, bn, eps=1e-5):
    # Inference-mode BN folded into preceding linear:
    #   scale = gamma * rsqrt(var + eps); w' = w*scale; b' = (b-mu)*scale + beta
    gamma, beta, mean, var = bn
    scale = gamma * jax.lax.rsqrt(var + eps)           # (1, out)
    return w * scale, (b - mean) * scale + beta


def build_mlpnet_params(key, indim, hiddim, outdim, n_classes, n_layers,
                        mlp_layers):
    """Returns (w_stack[bf16, L,128,128], b_stack[f32, 8,128], n_node_layers)."""
    assert max(indim, hiddim, outdim, n_classes) <= LANE, \
        "operand-stacking path assumes all feature dims fit in one 128 lane tile"
    weights, biases = [], []

    # Node MLP stack; ReLU after every linear, BN folded into the last linear
    # of each MultiLinearLayer block.  Dropout after each block = identity.
    sizes = [indim] + [hiddim] * (n_layers - 1) + [outdim]
    for i in range(len(sizes) - 1):
        dims = [sizes[i]] + [hiddim] * (mlp_layers - 1) + [sizes[i + 1]]
        for j in range(mlp_layers):
            key, sub = jax.random.split(key)
            w, b = init_linear(sub, dims[j], dims[j + 1])
            if j == mlp_layers - 1:            # external BatchNorm1d -> fold
                key, sub = jax.random.split(key)
                bn = init_bn(sub, sizes[i + 1])
                w, b = fold_bn(w, b, bn)
            weights.append(_pad_to(w, (LANE, LANE)))
            biases.append(_pad_to(b, (1, LANE)))
    n_node_layers = len(weights)

    # Readout MLP.
    ro_dims = [outdim, outdim // 2, outdim // 4, n_classes]
    for j in range(3):
        key, sub = jax.random.split(key)
        w, b = init_linear(sub, ro_dims[j], ro_dims[j + 1])
        weights.append(_pad_to(w, (LANE, LANE)))
        biases.append(_pad_to(b, (1, LANE)))

    w_stack = jnp.stack(weights).astype(jnp.bfloat16)      # [L, 128, 128] bf16
    b_stack = jnp.concatenate(biases, axis=0)               # [L, 128] f32
    b_stack = _pad_to(b_stack, (_round_up(b_stack.shape[0], SUBLANE), LANE))
    return w_stack, b_stack, n_node_layers


# ----------------------------------------------------------------------------
if __name__ == "__main__":
    key = jax.random.PRNGKey(0)

    # net_params (synthetic): L=2, mlp_layers=2, batch_norm=True, ReLU,
    # gated=False, linear_type='regular', bias=True.
    INDIM, HIDDIM, OUTDIM, NCLASS = 32, 64, 32, 4
    N_LAYERS, MLP_LAYERS = 2, 2

    # Batched graph: 2 graphs of 8 nodes each -> 16 nodes total.
    N_NODES, N_GRAPHS = 16, 2
    nodes_per_graph = N_NODES // N_GRAPHS

    key, k_h = jax.random.split(key)
    h = jax.random.normal(k_h, (N_NODES, INDIM), jnp.float32)

    # mean_nodes pooling matrix: M[g, n] = 1/|V_g| for n in graph g.
    graph_ids = jnp.repeat(jnp.arange(N_GRAPHS), nodes_per_graph)
    pool_mat = (jnp.arange(N_GRAPHS)[:, None] == graph_ids[None, :]).astype(
        jnp.float32) / float(nodes_per_graph)

    # Pad activations / pooling matrix: nodes to 8-multiple sublanes, feature
    # dim and graph rows padded so the kernel sees lane/sublane-dense tiles.
    n_nodes_pad = _round_up(N_NODES, SUBLANE)
    n_graphs_pad = _round_up(N_GRAPHS, SUBLANE)
    h_pad = _pad_to(h, (n_nodes_pad, _round_up(INDIM, LANE)))
    pool_pad = _pad_to(pool_mat, (n_graphs_pad, n_nodes_pad))

    key, k_p = jax.random.split(key)
    w_stack, b_stack, n_node_layers = build_mlpnet_params(
        k_p, INDIM, HIDDIM, OUTDIM, NCLASS, N_LAYERS, MLP_LAYERS)

    logits = mlpnet_forward(h_pad, w_stack, b_stack, pool_pad,
                            N_GRAPHS, NCLASS, n_node_layers)
    jax.block_until_ready(logits)
    assert logits.shape == (N_GRAPHS, NCLASS)
    assert bool(jnp.all(jnp.isfinite(logits)))
    print("KERNEL_OK")
</pallas_src>

<mosaic_0001>
module attributes {stable_mosaic.version = 11 : i64} {
  func.func @_fused_mlpnet_kernel(%arg0: memref<16x128xf32, #tpu.memory_space<vmem>>, %arg1: memref<7x128x128xbf16, #tpu.memory_space<vmem>>, %arg2: memref<8x128xf32, #tpu.memory_space<vmem>>, %arg3: memref<8x16xf32, #tpu.memory_space<vmem>>, %arg4: memref<8x128xf32, #tpu.memory_space<vmem>>) attributes {dimension_semantics = [], scalar_prefetch = 0 : i64, scratch_operands = 0 : i64, tpu.core_type = #tpu.core_type<tc>} {
    %c0 = arith.constant 0 : index
    %c0_0 = arith.constant 0 : index
    %0 = vector.load %arg0[%c0, %c0_0] : memref<16x128xf32, #tpu.memory_space<vmem>>, vector<16x128xf32>
    %1 = arith.truncf %0 : vector<16x128xf32> to vector<16x128xbf16>
    %c0_1 = arith.constant 0 : index
    %c0_2 = arith.constant 0 : index
    %c0_3 = arith.constant 0 : index
    %2 = vector.load %arg1[%c0_1, %c0_2, %c0_3] : memref<7x128x128xbf16, #tpu.memory_space<vmem>>, vector<1x128x128xbf16>
    %3 = vector.shape_cast %2 : vector<1x128x128xbf16> to vector<128x128xbf16>
    %cst = arith.constant dense<0.000000e+00> : vector<16x128xf32>
    %4 = tpu.matmul %1, %3, %cst {dimension_numbers = #tpu.dot_dimension_numbers<[1], [0], [0], [1], [0, 0, 1, 1], [], []>} : vector<16x128xbf16>, vector<128x128xbf16>, vector<16x128xf32> -> vector<16x128xf32>
    %c0_4 = arith.constant 0 : index
    %c0_5 = arith.constant 0 : index
    %5 = vector.load %arg2[%c0_4, %c0_5] : memref<8x128xf32, #tpu.memory_space<vmem>>, vector<1x128xf32>
    %6 = vector.shape_cast %5 : vector<1x128xf32> to vector<128xf32>
    %7 = vector.shape_cast %6 : vector<128xf32> to vector<1x128xf32>
    %8 = vector.broadcast %7 : vector<1x128xf32> to vector<16x128xf32>
    %9 = arith.addf %4, %8 : vector<16x128xf32>
    %cst_6 = arith.constant 0.000000e+00 : f32
    %10 = vector.broadcast %cst_6 : f32 to vector<16x128xf32>
    %11 = arith.maximumf %9, %10 : vector<16x128xf32>
    %12 = arith.truncf %11 : vector<16x128xf32> to vector<16x128xbf16>
    %c1 = arith.constant 1 : index
    %c0_7 = arith.constant 0 : index
    %c0_8 = arith.constant 0 : index
    %13 = vector.load %arg1[%c1, %c0_7, %c0_8] : memref<7x128x128xbf16, #tpu.memory_space<vmem>>, vector<1x128x128xbf16>
    %14 = vector.shape_cast %13 : vector<1x128x128xbf16> to vector<128x128xbf16>
    %cst_9 = arith.constant dense<0.000000e+00> : vector<16x128xf32>
    %15 = tpu.matmul %12, %14, %cst_9 {dimension_numbers = #tpu.dot_dimension_numbers<[1], [0], [0], [1], [0, 0, 1, 1], [], []>} : vector<16x128xbf16>, vector<128x128xbf16>, vector<16x128xf32> -> vector<16x128xf32>
    %c1_10 = arith.constant 1 : index
    %c0_11 = arith.constant 0 : index
    %16 = vector.load %arg2[%c1_10, %c0_11] : memref<8x128xf32, #tpu.memory_space<vmem>>, vector<1x128xf32>
    %17 = vector.shape_cast %16 : vector<1x128xf32> to vector<128xf32>
    %18 = vector.shape_cast %17 : vector<128xf32> to vector<1x128xf32>
    %19 = vector.broadcast %18 : vector<1x128xf32> to vector<16x128xf32>
    %20 = arith.addf %15, %19 : vector<16x128xf32>
    %cst_12 = arith.constant 0.000000e+00 : f32
    %21 = vector.broadcast %cst_12 : f32 to vector<16x128xf32>
    %22 = arith.maximumf %20, %21 : vector<16x128xf32>
    %23 = arith.truncf %22 : vector<16x128xf32> to vector<16x128xbf16>
    %c2 = arith.constant 2 : index
    %c0_13 = arith.constant 0 : index
    %c0_14 = arith.constant 0 : index
    %24 = vector.load %arg1[%c2, %c0_13, %c0_14] : memref<7x128x128xbf16, #tpu.memory_space<vmem>>, vector<1x128x128xbf16>
    %25 = vector.shape_cast %24 : vector<1x128x128xbf16> to vector<128x128xbf16>
    %cst_15 = arith.constant dense<0.000000e+00> : vector<16x128xf32>
    %26 = tpu.matmul %23, %25, %cst_15 {dimension_numbers = #tpu.dot_dimension_numbers<[1], [0], [0], [1], [0, 0, 1, 1], [], []>} : vector<16x128xbf16>, vector<128x128xbf16>, vector<16x128xf32> -> vector<16x128xf32>
    %c2_16 = arith.constant 2 : index
    %c0_17 = arith.constant 0 : index
    %27 = vector.load %arg2[%c2_16, %c0_17] : memref<8x128xf32, #tpu.memory_space<vmem>>, vector<1x128xf32>
    %28 = vector.shape_cast %27 : vector<1x128xf32> to vector<128xf32>
    %29 = vector.shape_cast %28 : vector<128xf32> to vector<1x128xf32>
    %30 = vector.broadcast %29 : vector<1x128xf32> to vector<16x128xf32>
    %31 = arith.addf %26, %30 : vector<16x128xf32>
    %cst_18 = arith.constant 0.000000e+00 : f32
    %32 = vector.broadcast %cst_18 : f32 to vector<16x128xf32>
    %33 = arith.maximumf %31, %32 : vector<16x128xf32>
    %34 = arith.truncf %33 : vector<16x128xf32> to vector<16x128xbf16>
    %c3 = arith.constant 3 : index
    %c0_19 = arith.constant 0 : index
    %c0_20 = arith.constant 0 : index
    %35 = vector.load %arg1[%c3, %c0_19, %c0_20] : memref<7x128x128xbf16, #tpu.memory_space<vmem>>, vector<1x128x128xbf16>
    %36 = vector.shape_cast %35 : vector<1x128x128xbf16> to vector<128x128xbf16>
    %cst_21 = arith.constant dense<0.000000e+00> : vector<16x128xf32>
    %37 = tpu.matmul %34, %36, %cst_21 {dimension_numbers = #tpu.dot_dimension_numbers<[1], [0], [0], [1], [0, 0, 1, 1], [], []>} : vector<16x128xbf16>, vector<128x128xbf16>, vector<16x128xf32> -> vector<16x128xf32>
    %c3_22 = arith.constant 3 : index
    %c0_23 = arith.constant 0 : index
    %38 = vector.load %arg2[%c3_22, %c0_23] : memref<8x128xf32, #tpu.memory_space<vmem>>, vector<1x128xf32>
    %39 = vector.shape_cast %38 : vector<1x128xf32> to vector<128xf32>
    %40 = vector.shape_cast %39 : vector<128xf32> to vector<1x128xf32>
    %41 = vector.broadcast %40 : vector<1x128xf32> to vector<16x128xf32>
    %42 = arith.addf %37, %41 : vector<16x128xf32>
    %cst_24 = arith.constant 0.000000e+00 : f32
    %43 = vector.broadcast %cst_24 : f32 to vector<16x128xf32>
    %44 = arith.maximumf %42, %43 : vector<16x128xf32>
    %c0_25 = arith.constant 0 : index
    %c0_26 = arith.constant 0 : index
    %45 = vector.load %arg3[%c0_25, %c0_26] : memref<8x16xf32, #tpu.memory_space<vmem>>, vector<8x16xf32>
    %46 = arith.truncf %45 : vector<8x16xf32> to vector<8x16xbf16>
    %47 = arith.truncf %44 : vector<16x128xf32> to vector<16x128xbf16>
    %cst_27 = arith.constant dense<0.000000e+00> : vector<8x128xf32>
    %48 = tpu.matmul %46, %47, %cst_27 {dimension_numbers = #tpu.dot_dimension_numbers<[1], [0], [0], [1], [0, 0, 1, 1], [], []>} : vector<8x16xbf16>, vector<16x128xbf16>, vector<8x128xf32> -> vector<8x128xf32>
    %49 = arith.truncf %48 : vector<8x128xf32> to vector<8x128xbf16>
    %c4 = arith.constant 4 : index
    %c0_28 = arith.constant 0 : index
    %c0_29 = arith.constant 0 : index
    %50 = vector.load %arg1[%c4, %c0_28, %c0_29] : memref<7x128x128xbf16, #tpu.memory_space<vmem>>, vector<1x128x128xbf16>
    %51 = vector.shape_cast %50 : vector<1x128x128xbf16> to vector<128x128xbf16>
    %cst_30 = arith.constant dense<0.000000e+00> : vector<8x128xf32>
    %52 = tpu.matmul %49, %51, %cst_30 {dimension_numbers = #tpu.dot_dimension_numbers<[1], [0], [0], [1], [0, 0, 1, 1], [], []>} : vector<8x128xbf16>, vector<128x128xbf16>, vector<8x128xf32> -> vector<8x128xf32>
    %c4_31 = arith.constant 4 : index
    %c0_32 = arith.constant 0 : index
    %53 = vector.load %arg2[%c4_31, %c0_32] : memref<8x128xf32, #tpu.memory_space<vmem>>, vector<1x128xf32>
    %54 = vector.shape_cast %53 : vector<1x128xf32> to vector<128xf32>
    %55 = vector.shape_cast %54 : vector<128xf32> to vector<1x128xf32>
    %56 = vector.broadcast %55 : vector<1x128xf32> to vector<8x128xf32>
    %57 = arith.addf %52, %56 : vector<8x128xf32>
    %cst_33 = arith.constant 0.000000e+00 : f32
    %58 = vector.broadcast %cst_33 : f32 to vector<8x128xf32>
    %59 = arith.maximumf %57, %58 : vector<8x128xf32>
    %60 = arith.truncf %59 : vector<8x128xf32> to vector<8x128xbf16>
    %c5 = arith.constant 5 : index
    %c0_34 = arith.constant 0 : index
    %c0_35 = arith.constant 0 : index
    %61 = vector.load %arg1[%c5, %c0_34, %c0_35] : memref<7x128x128xbf16, #tpu.memory_space<vmem>>, vector<1x128x128xbf16>
    %62 = vector.shape_cast %61 : vector<1x128x128xbf16> to vector<128x128xbf16>
    %cst_36 = arith.constant dense<0.000000e+00> : vector<8x128xf32>
    %63 = tpu.matmul %60, %62, %cst_36 {dimension_numbers = #tpu.dot_dimension_numbers<[1], [0], [0], [1], [0, 0, 1, 1], [], []>} : vector<8x128xbf16>, vector<128x128xbf16>, vector<8x128xf32> -> vector<8x128xf32>
    %c5_37 = arith.constant 5 : index
    %c0_38 = arith.constant 0 : index
    %64 = vector.load %arg2[%c5_37, %c0_38] : memref<8x128xf32, #tpu.memory_space<vmem>>, vector<1x128xf32>
    %65 = vector.shape_cast %64 : vector<1x128xf32> to vector<128xf32>
    %66 = vector.shape_cast %65 : vector<128xf32> to vector<1x128xf32>
    %67 = vector.broadcast %66 : vector<1x128xf32> to vector<8x128xf32>
    %68 = arith.addf %63, %67 : vector<8x128xf32>
    %cst_39 = arith.constant 0.000000e+00 : f32
    %69 = vector.broadcast %cst_39 : f32 to vector<8x128xf32>
    %70 = arith.maximumf %68, %69 : vector<8x128xf32>
    %71 = arith.truncf %70 : vector<8x128xf32> to vector<8x128xbf16>
    %c6 = arith.constant 6 : index
    %c0_40 = arith.constant 0 : index
    %c0_41 = arith.constant 0 : index
    %72 = vector.load %arg1[%c6, %c0_40, %c0_41] : memref<7x128x128xbf16, #tpu.memory_space<vmem>>, vector<1x128x128xbf16>
    %73 = vector.shape_cast %72 : vector<1x128x128xbf16> to vector<128x128xbf16>
    %cst_42 = arith.constant dense<0.000000e+00> : vector<8x128xf32>
    %74 = tpu.matmul %71, %73, %cst_42 {dimension_numbers = #tpu.dot_dimension_numbers<[1], [0], [0], [1], [0, 0, 1, 1], [], []>} : vector<8x128xbf16>, vector<128x128xbf16>, vector<8x128xf32> -> vector<8x128xf32>
    %c6_43 = arith.constant 6 : index
    %c0_44 = arith.constant 0 : index
    %75 = vector.load %arg2[%c6_43, %c0_44] : memref<8x128xf32, #tpu.memory_space<vmem>>, vector<1x128xf32>
    %76 = vector.shape_cast %75 : vector<1x128xf32> to vector<128xf32>
    %77 = vector.shape_cast %76 : vector<128xf32> to vector<1x128xf32>
    %78 = vector.broadcast %77 : vector<1x128xf32> to vector<8x128xf32>
    %79 = arith.addf %74, %78 : vector<8x128xf32>
    %c0_45 = arith.constant 0 : index
    %c0_46 = arith.constant 0 : index
    %80 = vector.load %arg4[%c0_45, %c0_46] : memref<8x128xf32, #tpu.memory_space<vmem>>, vector<8x128xf32>
    tpu.vector_store %arg4[%c0_45, %c0_46], %79 {strides = array<i32>} : memref<8x128xf32, #tpu.memory_space<vmem>>, vector<8x128xf32>,
    return
  }
}

</mosaic_0001>

<llo_original>
// kernel: tpu_custom_call.1
$region0: #{tpu_custom_call.1}
  #allocation0 [shape = 'u32[]', space=smem, size = 0x4, offset = 0x4, fixed_abs, tag = 'smem constant byte address 0x4 - core index']
  #allocation1 [shape = 'u32[144,128]{1,0:T(1,128)}', space=vmem, size = 0x12000, scoped, tag = 'internal scratch']
  %s0 = inlined_call_operand.hbm [shape: f32[16,128], index: 0, kind: input, shape index: {}]
  %s1 = inlined_call_operand.hbm [shape: bf16[7,128,128], index: 1, kind: input, shape index: {}]
  %s2 = inlined_call_operand.hbm [shape: f32[8,128], index: 2, kind: input, shape index: {}]
  %s3 = inlined_call_operand.hbm [shape: f32[8,16], index: 3, kind: input, shape index: {}]
  %s4 = inlined_call_operand.hbm [shape: f32[8,128], index: 4, kind: output, shape index: {}]
  %s5 = sld [smem:[#allocation0]]
  $region42: #{tpu_custom_call.1} parent=0
    _
  %s7 = ssub.s32 1, %s5
  %s8 = scalar_select 0, %s7, %s5
  $region1: #{tpu_custom_call.1} parent=0
    #allocation2 [shape = 'u8[8192]{0}', space=vmem, size = 0x2000, scoped, tag = 'input window, operand 0, single buffered']
    #allocation3 [shape = 's32[1]{0}', space=sflag, size = 0x4, scoped, tag = 'scoped memory for tpu_custom_call.1']
    #allocation4 [shape = 's32[1]{0}', space=sflag, size = 0x4, scoped, tag = 'scoped memory for tpu_custom_call.1']
    #allocation5 [shape = 'u8[229376]{0}', space=vmem, size = 0x38000, scoped, tag = 'input window, operand 1, single buffered']
    #allocation6 [shape = 's32[1]{0}', space=sflag, size = 0x4, scoped, tag = 'scoped memory for tpu_custom_call.1']
    #allocation7 [shape = 'u8[4096]{0}', space=vmem, size = 0x1000, scoped, tag = 'input window, operand 2, single buffered']
    #allocation8 [shape = 'u8[4096]{0}', space=vmem, size = 0x1000, scoped, tag = 'input window, operand 3, single buffered']
    #allocation9 [shape = 's32[1]{0}', space=sflag, size = 0x4, scoped, tag = 'scoped memory for tpu_custom_call.1']
    #allocation10 [shape = 'u8[4096]{0}', space=vmem, size = 0x1000, scoped, tag = 'output window, operand 0, single buffered']
    %9 = vsyncpa [#allocation3], 0
    %10 = vsyncpa [#allocation6], 0
    %11 = vsyncpa [#allocation9], 0
    %12 = vsyncpa [#allocation4], 0
    // Predicated region
    $region2: #{tpu_custom_call.1} parent=1 // pred_check
      _
    $region3: #{tpu_custom_call.1} parent=1 // pred_check_branch
      %14 = sbr.rel (0) target = $region5
    $region4: #{tpu_custom_call.1} parent=1 // pred_region
      %s16 = ssub.s32 256, 256
      %17 = vsyncadd [#allocation3], %s16
      %s18 = sshll.u32 [#allocation2], 4
      %s19 = int_to_ptr.vmem [resolvable:$true] %s18
      %24 = dma.hbm_to_vmem [thread:$0]  %s0, 256, %s19, [#allocation3], 128, 128, 8
    $region5: #{tpu_custom_call.1} parent=1 // pred_fallthru
      _
    // Predicated region
    $region6: #{tpu_custom_call.1} parent=1 // pred_check
      _
    $region7: #{tpu_custom_call.1} parent=1 // pred_check_branch
      %26 = sbr.rel (0) target = $region9
    $region8: #{tpu_custom_call.1} parent=1 // pred_region
      %s28 = ssub.s32 7168, 7168
      %29 = vsyncadd [#allocation6], %s28
      %s30 = sshll.u32 [#allocation5], 4
      %s31 = int_to_ptr.vmem [resolvable:$true] %s30
      %36 = dma.hbm_to_vmem [thread:$0]  %s1, 7168, %s31, [#allocation6], 64, 64, 4
    $region9: #{tpu_custom_call.1} parent=1 // pred_fallthru
      _
    // Predicated region
    $region10: #{tpu_custom_call.1} parent=1 // pred_check
      _
    $region11: #{tpu_custom_call.1} parent=1 // pred_check_branch
      %38 = sbr.rel (0) target = $region13
    $region12: #{tpu_custom_call.1} parent=1 // pred_region
      %s40 = ssub.s32 128, 128
      %41 = vsyncadd [#allocation6], %s40
      %s43 = sshll.u32 [#allocation7], 4
      %s44 = int_to_ptr.vmem [resolvable:$true] %s43
      %46 = dma.hbm_to_vmem [thread:$0]  %s2, 128, %s44, [#allocation6]
    $region13: #{tpu_custom_call.1} parent=1 // pred_fallthru
      _
    // Predicated region
    $region14: #{tpu_custom_call.1} parent=1 // pred_check
      _
    $region15: #{tpu_custom_call.1} parent=1 // pred_check_branch
      %48 = sbr.rel (0) target = $region17
    $region16: #{tpu_custom_call.1} parent=1 // pred_region
      %s50 = ssub.s32 128, 128
      %51 = vsyncadd [#allocation9], %s50
      %s53 = sshll.u32 [#allocation8], 4
      %s54 = int_to_ptr.vmem [resolvable:$true] %s53
      %56 = dma.hbm_to_vmem [thread:$0]  %s3, 128, %s54, [#allocation9]
    $region17: #{tpu_custom_call.1} parent=1 // pred_fallthru
      _
    // Predicated region
    $region18: #{tpu_custom_call.1} parent=1 // pred_check
      _
    $region19: #{tpu_custom_call.1} parent=1 // pred_check_branch
      %58 = sbr.rel (0) target = $region21
    $region20: #{tpu_custom_call.1} parent=1 // pred_region
      %59 = dma.done [#allocation3], 256
    $region21: #{tpu_custom_call.1} parent=1 // pred_fallthru
      _
    // Predicated region
    $region22: #{tpu_custom_call.1} parent=1 // pred_check
      _
    $region23: #{tpu_custom_call.1} parent=1 // pred_check_branch
      %61 = sbr.rel (0) target = $region25
    $region24: #{tpu_custom_call.1} parent=1 // pred_region
      %62 = dma.done [#allocation6], 7168
    $region25: #{tpu_custom_call.1} parent=1 // pred_fallthru
      _
    // Predicated region
    $region26: #{tpu_custom_call.1} parent=1 // pred_check
      _
    $region27: #{tpu_custom_call.1} parent=1 // pred_check_branch
      %64 = sbr.rel (0) target = $region29
    $region28: #{tpu_custom_call.1} parent=1 // pred_region
      %65 = dma.done [#allocation6], 128
    $region29: #{tpu_custom_call.1} parent=1 // pred_fallthru
      _
    // Predicated region
    $region30: #{tpu_custom_call.1} parent=1 // pred_check
      _
    $region31: #{tpu_custom_call.1} parent=1 // pred_check_branch
      %67 = sbr.rel (0) target = $region33
    $region32: #{tpu_custom_call.1} parent=1 // pred_region
      %68 = dma.done [#allocation9], 128
    $region33: #{tpu_custom_call.1} parent=1 // pred_fallthru
      _
    %v70 = vld [vmem:[#allocation2] sm:$0xff]
    %v71 = vld [vmem:[#allocation2 + $0x8] sm:$0xff]
    %v72 = vpack.c.bf16 %v71, %v70
    %v73 = vld [vmem:[#allocation5] sm:$0xf]
    %v74 = vld [vmem:[#allocation5 + $0x4] sm:$0xf]
    %v75 = vld [vmem:[#allocation5 + $0x8] sm:$0xf]
    %v76 = vld [vmem:[#allocation5 + $0xc] sm:$0xf]
    %v77 = vld [vmem:[#allocation5 + $0x10] sm:$0xf]
    %v78 = vld [vmem:[#allocation5 + $0x14] sm:$0xf]
    %v79 = vld [vmem:[#allocation5 + $0x18] sm:$0xf]
    %v80 = vld [vmem:[#allocation5 + $0x1c] sm:$0xf]
    %v81 = vld [vmem:[#allocation5 + $0x20] sm:$0xf]
    %v82 = vld [vmem:[#allocation5 + $0x24] sm:$0xf]
    %v83 = vld [vmem:[#allocation5 + $0x28] sm:$0xf]
    %v84 = vld [vmem:[#allocation5 + $0x2c] sm:$0xf]
    %v85 = vld [vmem:[#allocation5 + $0x30] sm:$0xf]
    %v86 = vld [vmem:[#allocation5 + $0x34] sm:$0xf]
    %v87 = vld [vmem:[#allocation5 + $0x38] sm:$0xf]
    %v88 = vld [vmem:[#allocation5 + $0x3c] sm:$0xf]
    %v89 = vld [vmem:[#allocation7] sm:$0x1]
    %v90 = vlaneseq
    %v91 = vshrl.u32 %v90, 7
    %v92 = vsub.s32 0, %v91
    %v93 = vrot.slane %v89, %v92
    %v110 = vunpack.c.l.b16 %v73
    %v111 = vunpack.c.l.b16 %v74
    %v112 = vunpack.c.l.b16 %v75
    %v113 = vunpack.c.l.b16 %v76
    %v114 = vunpack.c.l.b16 %v77
    %v115 = vunpack.c.l.b16 %v78
    %v116 = vunpack.c.l.b16 %v79
    %v117 = vunpack.c.l.b16 %v80
    %v118 = vunpack.c.l.b16 %v81
    %v119 = vunpack.c.l.b16 %v82
    %v120 = vunpack.c.l.b16 %v83
    %v121 = vunpack.c.l.b16 %v84
    %v122 = vunpack.c.l.b16 %v85
    %v123 = vunpack.c.l.b16 %v86
    %v124 = vunpack.c.l.b16 %v87
    %v125 = vunpack.c.l.b16 %v88
    %v126 = vpack.c.b16 %v111, %v110
    %v127 = vpack.c.b16 %v113, %v112
    %v128 = vpack.c.b16 %v115, %v114
    %v129 = vpack.c.b16 %v117, %v116
    %v130 = vpack.c.b16 %v119, %v118
    %v131 = vpack.c.b16 %v121, %v120
    %v132 = vpack.c.b16 %v123, %v122
    %v133 = vpack.c.b16 %v125, %v124
    %142 = vmatprep.subr.bf16.mxu0 0
    %143 = vmatpush1.bf16.msra.mxu0 %v133
    %144 = vmatprep.subr.bf16.mxu0 0
    %145 = vmatpush1.bf16.msra.mxu0 %v132
    %146 = vmatprep.subr.bf16.mxu0 0
    %147 = vmatpush1.bf16.msra.mxu0 %v131
    %148 = vmatprep.subr.bf16.mxu0 0
    %149 = vmatpush1.bf16.msra.mxu0 %v130
    %150 = vmatprep.subr.bf16.mxu0 0
    %151 = vmatpush1.bf16.msra.mxu0 %v129
    %152 = vmatprep.subr.bf16.mxu0 0
    %153 = vmatpush1.bf16.msra.mxu0 %v128
    %154 = vmatprep.subr.bf16.mxu0 0
    %155 = vmatpush1.bf16.msra.mxu0 %v127
    %156 = vmatprep.subr.bf16.mxu0 0
    %157 = vmatpush1.bf16.msra.mxu0 %v126
    %158 = vmatprep.subr.bf16.mxu0 0
    %159 = vmatpush2.bf16.msra.mxu0 0
    %160 = vmatprep.subr.bf16.mxu0 0
    %161 = vmatpush2.bf16.msra.mxu0 0
    %162 = vmatprep.subr.bf16.mxu0 0
    %163 = vmatpush2.bf16.msra.mxu0 0
    %164 = vmatprep.subr.bf16.mxu0 0
    %165 = vmatpush2.bf16.msra.mxu0 0
    %166 = vmatprep.subr.bf16.mxu0 0
    %167 = vmatpush2.bf16.msra.mxu0 0
    %168 = vmatprep.subr.bf16.mxu0 0
    %169 = vmatpush2.bf16.msra.mxu0 0
    %170 = vmatprep.subr.bf16.mxu0 0
    %171 = vmatpush2.bf16.msra.mxu0 0
    %172 = vmatprep.subr.bf16.mxu0 0
    %173 = vmatpush2.bf16.msra.mxu0 0
    %174 = vmatprep.mubr.bf16.mxu0 0
    %175 = vmatmul.mubr.bf16.gmra.mxu0 %v72
    %v176 = vpop.f32.mrf.mxu0
    %v177 = vadd.f32 %v93, %v176
    %v178 = vpop.f32.mrf.mxu0
    %v179 = vpop.f32.mrf.mxu0
    %v180 = vadd.f32 %v93, %v179
    %v181 = vpop.f32.mrf.mxu0
    %182 = vdwg.mxu0
    %v183 = vmax.f32 %v177, 0.0
    %v184 = vmax.f32 %v180, 0.0
    %v185 = vpack.c.bf16 %v184, %v183
    %s186 = scalar_lea.vmem [#allocation5], 64
    %v187 = vld [vmem:[%s186] sm:$0xf]
    %v188 = vld [vmem:[%s186 + $0x4] sm:$0xf]
    %v189 = vld [vmem:[%s186 + $0x8] sm:$0xf]
    %v190 = vld [vmem:[%s186 + $0xc] sm:$0xf]
    %v191 = vld [vmem:[%s186 + $0x10] sm:$0xf]
    %v192 = vld [vmem:[%s186 + $0x14] sm:$0xf]
    %v193 = vld [vmem:[%s186 + $0x18] sm:$0xf]
    %v194 = vld [vmem:[%s186 + $0x1c] sm:$0xf]
    %v195 = vld [vmem:[%s186 + $0x20] sm:$0xf]
    %v196 = vld [vmem:[%s186 + $0x24] sm:$0xf]
    %v197 = vld [vmem:[%s186 + $0x28] sm:$0xf]
    %v198 = vld [vmem:[%s186 + $0x2c] sm:$0xf]
    %v199 = vld [vmem:[%s186 + $0x30] sm:$0xf]
    %v200 = vld [vmem:[%s186 + $0x34] sm:$0xf]
    %v201 = vld [vmem:[%s186 + $0x38] sm:$0xf]
    %v202 = vld [vmem:[%s186 + $0x3c] sm:$0xf]
    %v203 = vld [vmem:[#allocation7 + $0x1] sm:$0x1]
    %v204 = vlaneseq
    %v205 = vshrl.u32 %v204, 7
    %v206 = vsub.s32 0, %v205
    %v207 = vrot.slane %v203, %v206
    %v224 = vunpack.c.l.b16 %v187
    %v225 = vunpack.c.l.b16 %v188
    %v226 = vunpack.c.l.b16 %v189
    %v227 = vunpack.c.l.b16 %v190
    %v228 = vunpack.c.l.b16 %v191
    %v229 = vunpack.c.l.b16 %v192
    %v230 = vunpack.c.l.b16 %v193
    %v231 = vunpack.c.l.b16 %v194
    %v232 = vunpack.c.l.b16 %v195
    %v233 = vunpack.c.l.b16 %v196
    %v234 = vunpack.c.l.b16 %v197
    %v235 = vunpack.c.l.b16 %v198
    %v236 = vunpack.c.l.b16 %v199
    %v237 = vunpack.c.l.b16 %v200
    %v238 = vunpack.c.l.b16 %v201
    %v239 = vunpack.c.l.b16 %v202
    %v240 = vpack.c.b16 %v225, %v224
    %v241 = vpack.c.b16 %v227, %v226
    %v242 = vpack.c.b16 %v229, %v228
    %v243 = vpack.c.b16 %v231, %v230
    %v244 = vpack.c.b16 %v233, %v232
    %v245 = vpack.c.b16 %v235, %v234
    %v246 = vpack.c.b16 %v237, %v236
    %v247 = vpack.c.b16 %v239, %v238
    %256 = vmatprep.subr.bf16.mxu0 0
    %257 = vmatpush1.bf16.msra.mxu0 %v247
    %258 = vmatprep.subr.bf16.mxu0 0
    %259 = vmatpush1.bf16.msra.mxu0 %v246
    %260 = vmatprep.subr.bf16.mxu0 0
    %261 = vmatpush1.bf16.msra.mxu0 %v245
    %262 = vmatprep.subr.bf16.mxu0 0
    %263 = vmatpush1.bf16.msra.mxu0 %v244
    %264 = vmatprep.subr.bf16.mxu0 0
    %265 = vmatpush1.bf16.msra.mxu0 %v243
    %266 = vmatprep.subr.bf16.mxu0 0
    %267 = vmatpush1.bf16.msra.mxu0 %v242
    %268 = vmatprep.subr.bf16.mxu0 0
    %269 = vmatpush1.bf16.msra.mxu0 %v241
    %270 = vmatprep.subr.bf16.mxu0 0
    %271 = vmatpush1.bf16.msra.mxu0 %v240
    %272 = vmatprep.subr.bf16.mxu0 0
    %273 = vmatpush2.bf16.msra.mxu0 0
    %274 = vmatprep.subr.bf16.mxu0 0
    %275 = vmatpush2.bf16.msra.mxu0 0
    %276 = vmatprep.subr.bf16.mxu0 0
    %277 = vmatpush2.bf16.msra.mxu0 0
    %278 = vmatprep.subr.bf16.mxu0 0
    %279 = vmatpush2.bf16.msra.mxu0 0
    %280 = vmatprep.subr.bf16.mxu0 0
    %281 = vmatpush2.bf16.msra.mxu0 0
    %282 = vmatprep.subr.bf16.mxu0 0
    %283 = vmatpush2.bf16.msra.mxu0 0
    %284 = vmatprep.subr.bf16.mxu0 0
    %285 = vmatpush2.bf16.msra.mxu0 0
    %286 = vmatprep.subr.bf16.mxu0 0
    %287 = vmatpush2.bf16.msra.mxu0 0
    %288 = vmatprep.mubr.bf16.mxu0 0
    %289 = vmatmul.mubr.bf16.gmra.mxu0 %v185
    %v290 = vpop.f32.mrf.mxu0
    %v291 = vadd.f32 %v207, %v290
    %v292 = vpop.f32.mrf.mxu0
    %v293 = vpop.f32.mrf.mxu0
    %v294 = vadd.f32 %v207, %v293
    %v295 = vpop.f32.mrf.mxu0
    %296 = vdwg.mxu0
    %v297 = vmax.f32 %v291, 0.0
    %v298 = vmax.f32 %v294, 0.0
    %v299 = vpack.c.bf16 %v298, %v297
    %s300 = scalar_lea.vmem [#allocation5], 128
    %v301 = vld [vmem:[%s300] sm:$0xf]
    %v302 = vld [vmem:[%s300 + $0x4] sm:$0xf]
    %v303 = vld [vmem:[%s300 + $0x8] sm:$0xf]
    %v304 = vld [vmem:[%s300 + $0xc] sm:$0xf]
    %v305 = vld [vmem:[%s300 + $0x10] sm:$0xf]
    %v306 = vld [vmem:[%s300 + $0x14] sm:$0xf]
    %v307 = vld [vmem:[%s300 + $0x18] sm:$0xf]
    %v308 = vld [vmem:[%s300 + $0x1c] sm:$0xf]
    %v309 = vld [vmem:[%s300 + $0x20] sm:$0xf]
    %v310 = vld [vmem:[%s300 + $0x24] sm:$0xf]
    %v311 = vld [vmem:[%s300 + $0x28] sm:$0xf]
    %v312 = vld [vmem:[%s300 + $0x2c] sm:$0xf]
    %v313 = vld [vmem:[%s300 + $0x30] sm:$0xf]
    %v314 = vld [vmem:[%s300 + $0x34] sm:$0xf]
    %v315 = vld [vmem:[%s300 + $0x38] sm:$0xf]
    %v316 = vld [vmem:[%s300 + $0x3c] sm:$0xf]
    %v317 = vld [vmem:[#allocation7 + $0x2] sm:$0x1]
    %v318 = vlaneseq
    %v319 = vshrl.u32 %v318, 7
    %v320 = vsub.s32 0, %v319
    %v321 = vrot.slane %v317, %v320
    %v338 = vunpack.c.l.b16 %v301
    %v339 = vunpack.c.l.b16 %v302
    %v340 = vunpack.c.l.b16 %v303
    %v341 = vunpack.c.l.b16 %v304
    %v342 = vunpack.c.l.b16 %v305
    %v343 = vunpack.c.l.b16 %v306
    %v344 = vunpack.c.l.b16 %v307
    %v345 = vunpack.c.l.b16 %v308
    %v346 = vunpack.c.l.b16 %v309
    %v347 = vunpack.c.l.b16 %v310
    %v348 = vunpack.c.l.b16 %v311
    %v349 = vunpack.c.l.b16 %v312
    %v350 = vunpack.c.l.b16 %v313
    %v351 = vunpack.c.l.b16 %v314
    %v352 = vunpack.c.l.b16 %v315
    %v353 = vunpack.c.l.b16 %v316
    %v354 = vpack.c.b16 %v339, %v338
    %v355 = vpack.c.b16 %v341, %v340
    %v356 = vpack.c.b16 %v343, %v342
    %v357 = vpack.c.b16 %v345, %v344
    %v358 = vpack.c.b16 %v347, %v346
    %v359 = vpack.c.b16 %v349, %v348
    %v360 = vpack.c.b16 %v351, %v350
    %v361 = vpack.c.b16 %v353, %v352
    %370 = vmatprep.subr.bf16.mxu0 0
    %371 = vmatpush1.bf16.msra.mxu0 %v361
    %372 = vmatprep.subr.bf16.mxu0 0
    %373 = vmatpush1.bf16.msra.mxu0 %v360
    %374 = vmatprep.subr.bf16.mxu0 0
    %375 = vmatpush1.bf16.msra.mxu0 %v359
    %376 = vmatprep.subr.bf16.mxu0 0
    %377 = vmatpush1.bf16.msra.mxu0 %v358
    %378 = vmatprep.subr.bf16.mxu0 0
    %379 = vmatpush1.bf16.msra.mxu0 %v357
    %380 = vmatprep.subr.bf16.mxu0 0
    %381 = vmatpush1.bf16.msra.mxu0 %v356
    %382 = vmatprep.subr.bf16.mxu0 0
    %383 = vmatpush1.bf16.msra.mxu0 %v355
    %384 = vmatprep.subr.bf16.mxu0 0
    %385 = vmatpush1.bf16.msra.mxu0 %v354
    %386 = vmatprep.subr.bf16.mxu0 0
    %387 = vmatpush2.bf16.msra.mxu0 0
    %388 = vmatprep.subr.bf16.mxu0 0
    %389 = vmatpush2.bf16.msra.mxu0 0
    %390 = vmatprep.subr.bf16.mxu0 0
    %391 = vmatpush2.bf16.msra.mxu0 0
    %392 = vmatprep.subr.bf16.mxu0 0
    %393 = vmatpush2.bf16.msra.mxu0 0
    %394 = vmatprep.subr.bf16.mxu0 0
    %395 = vmatpush2.bf16.msra.mxu0 0
    %396 = vmatprep.subr.bf16.mxu0 0
    %397 = vmatpush2.bf16.msra.mxu0 0
    %398 = vmatprep.subr.bf16.mxu0 0
    %399 = vmatpush2.bf16.msra.mxu0 0
    %400 = vmatprep.subr.bf16.mxu0 0
    %401 = vmatpush2.bf16.msra.mxu0 0
    %402 = vmatprep.mubr.bf16.mxu0 0
    %403 = vmatmul.mubr.bf16.gmra.mxu0 %v299
    %v404 = vpop.f32.mrf.mxu0
    %v405 = vadd.f32 %v321, %v404
    %v406 = vpop.f32.mrf.mxu0
    %v407 = vpop.f32.mrf.mxu0
    %v408 = vadd.f32 %v321, %v407
    %v409 = vpop.f32.mrf.mxu0
    %410 = vdwg.mxu0
    %v411 = vmax.f32 %v405, 0.0
    %v412 = vmax.f32 %v408, 0.0
    %v413 = vpack.c.bf16 %v412, %v411
    %s414 = scalar_lea.vmem [#allocation5], 192
    %v415 = vld [vmem:[%s414] sm:$0xf]
    %v416 = vld [vmem:[%s414 + $0x4] sm:$0xf]
    %v417 = vld [vmem:[%s414 + $0x8] sm:$0xf]
    %v418 = vld [vmem:[%s414 + $0xc] sm:$0xf]
    %v419 = vld [vmem:[%s414 + $0x10] sm:$0xf]
    %v420 = vld [vmem:[%s414 + $0x14] sm:$0xf]
    %v421 = vld [vmem:[%s414 + $0x18] sm:$0xf]
    %v422 = vld [vmem:[%s414 + $0x1c] sm:$0xf]
    %v423 = vld [vmem:[%s414 + $0x20] sm:$0xf]
    %v424 = vld [vmem:[%s414 + $0x24] sm:$0xf]
    %v425 = vld [vmem:[%s414 + $0x28] sm:$0xf]
    %v426 = vld [vmem:[%s414 + $0x2c] sm:$0xf]
    %v427 = vld [vmem:[%s414 + $0x30] sm:$0xf]
    %v428 = vld [vmem:[%s414 + $0x34] sm:$0xf]
    %v429 = vld [vmem:[%s414 + $0x38] sm:$0xf]
    %v430 = vld [vmem:[%s414 + $0x3c] sm:$0xf]
    %v431 = vld [vmem:[#allocation7 + $0x3] sm:$0x1]
    %v432 = vlaneseq
    %v433 = vshrl.u32 %v432, 7
    %v434 = vsub.s32 0, %v433
    %v435 = vrot.slane %v431, %v434
    %v452 = vunpack.c.l.b16 %v415
    %v453 = vunpack.c.l.b16 %v416
    %v454 = vunpack.c.l.b16 %v417
    %v455 = vunpack.c.l.b16 %v418
    %v456 = vunpack.c.l.b16 %v419
    %v457 = vunpack.c.l.b16 %v420
    %v458 = vunpack.c.l.b16 %v421
    %v459 = vunpack.c.l.b16 %v422
    %v460 = vunpack.c.l.b16 %v423
    %v461 = vunpack.c.l.b16 %v424
    %v462 = vunpack.c.l.b16 %v425
    %v463 = vunpack.c.l.b16 %v426
    %v464 = vunpack.c.l.b16 %v427
    %v465 = vunpack.c.l.b16 %v428
    %v466 = vunpack.c.l.b16 %v429
    %v467 = vunpack.c.l.b16 %v430
    %v468 = vpack.c.b16 %v453, %v452
    %v469 = vpack.c.b16 %v455, %v454
    %v470 = vpack.c.b16 %v457, %v456
    %v471 = vpack.c.b16 %v459, %v458
    %v472 = vpack.c.b16 %v461, %v460
    %v473 = vpack.c.b16 %v463, %v462
    %v474 = vpack.c.b16 %v465, %v464
    %v475 = vpack.c.b16 %v467, %v466
    %484 = vmatprep.subr.bf16.mxu0 0
    %485 = vmatpush1.bf16.msra.mxu0 %v475
    %486 = vmatprep.subr.bf16.mxu0 0
    %487 = vmatpush1.bf16.msra.mxu0 %v474
    %488 = vmatprep.subr.bf16.mxu0 0
    %489 = vmatpush1.bf16.msra.mxu0 %v473
    %490 = vmatprep.subr.bf16.mxu0 0
    %491 = vmatpush1.bf16.msra.mxu0 %v472
    %492 = vmatprep.subr.bf16.mxu0 0
    %493 = vmatpush1.bf16.msra.mxu0 %v471
    %494 = vmatprep.subr.bf16.mxu0 0
    %495 = vmatpush1.bf16.msra.mxu0 %v470
    %496 = vmatprep.subr.bf16.mxu0 0
    %497 = vmatpush1.bf16.msra.mxu0 %v469
    %498 = vmatprep.subr.bf16.mxu0 0
    %499 = vmatpush1.bf16.msra.mxu0 %v468
    %500 = vmatprep.subr.bf16.mxu0 0
    %501 = vmatpush2.bf16.msra.mxu0 0
    %502 = vmatprep.subr.bf16.mxu0 0
    %503 = vmatpush2.bf16.msra.mxu0 0
    %504 = vmatprep.subr.bf16.mxu0 0
    %505 = vmatpush2.bf16.msra.mxu0 0
    %506 = vmatprep.subr.bf16.mxu0 0
    %507 = vmatpush2.bf16.msra.mxu0 0
    %508 = vmatprep.subr.bf16.mxu0 0
    %509 = vmatpush2.bf16.msra.mxu0 0
    %510 = vmatprep.subr.bf16.mxu0 0
    %511 = vmatpush2.bf16.msra.mxu0 0
    %512 = vmatprep.subr.bf16.mxu0 0
    %513 = vmatpush2.bf16.msra.mxu0 0
    %514 = vmatprep.subr.bf16.mxu0 0
    %515 = vmatpush2.bf16.msra.mxu0 0
    %516 = vmatprep.mubr.bf16.mxu0 0
    %517 = vmatmul.mubr.bf16.gmra.mxu0 %v413
    %v518 = vpop.f32.mrf.mxu0
    %v519 = vadd.f32 %v435, %v518
    %v520 = vpop.f32.mrf.mxu0
    %v521 = vpop.f32.mrf.mxu0
    %v522 = vadd.f32 %v435, %v521
    %v523 = vpop.f32.mrf.mxu0
    %524 = vdwg.mxu0
    %v525 = vmax.f32 %v519, 0.0
    %v526 = vmax.f32 %v522, 0.0
    %v527 = vld [vmem:[#allocation8] sm:$0xff]
    %v528 = vpack.c.bf16 %v527, %v527
    %v529 = vpack.c.bf16 %v526, %v525
    %vm530 = vcmask 130048
    %v532 = vsel %vm530, %v528, 0
    %534 = vmatprep.subr.bf16.mxu0 0
    %535 = vmatpush1.bf16.msra.mxu0 0
    %536 = vmatprep.subr.bf16.mxu0 0
    %537 = vmatpush1.bf16.msra.mxu0 0
    %538 = vmatprep.subr.bf16.mxu0 0
    %539 = vmatpush1.bf16.msra.mxu0 0
    %540 = vmatprep.subr.bf16.mxu0 0
    %541 = vmatpush1.bf16.msra.mxu0 0
    %542 = vmatprep.subr.bf16.mxu0 0
    %543 = vmatpush1.bf16.msra.mxu0 0
    %544 = vmatprep.subr.bf16.mxu0 0
    %545 = vmatpush1.bf16.msra.mxu0 0
    %546 = vmatprep.subr.bf16.mxu0 0
    %547 = vmatpush1.bf16.msra.mxu0 0
    %548 = vmatprep.subr.bf16.mxu0 0
    %549 = vmatpush1.bf16.msra.mxu0 %v529
    %550 = vmatprep.subr.bf16.mxu0 0
    %551 = vmatpush2.bf16.msra.mxu0 0
    %552 = vmatprep.subr.bf16.mxu0 0
    %553 = vmatpush2.bf16.msra.mxu0 0
    %554 = vmatprep.subr.bf16.mxu0 0
    %555 = vmatpush2.bf16.msra.mxu0 0
    %556 = vmatprep.subr.bf16.mxu0 0
    %557 = vmatpush2.bf16.msra.mxu0 0
    %558 = vmatprep.subr.bf16.mxu0 0
    %559 = vmatpush2.bf16.msra.mxu0 0
    %560 = vmatprep.subr.bf16.mxu0 0
    %561 = vmatpush2.bf16.msra.mxu0 0
    %562 = vmatprep.subr.bf16.mxu0 0
    %563 = vmatpush2.bf16.msra.mxu0 0
    %564 = vmatprep.subr.bf16.mxu0 0
    %565 = vmatpush2.bf16.msra.mxu0 0
    %566 = vmatprep.mubr.bf16.mxu0 0
    %567 = vmatmul.mubr.bf16.gmra.mxu0 %v532
    %v568 = vpop.f32.mrf.mxu0
    %v569 = vadd.f32 0.0, %v568
    %v570 = vpop.f32.mrf.mxu0
    %v571 = vpop.f32.mrf.mxu0
    %v572 = vpop.f32.mrf.mxu0
    %573 = vdwg.mxu0
    %v574 = vpack.c.bf16 %v569, %v569
    %s575 = scalar_lea.vmem [#allocation5], 256
    %v576 = vld [vmem:[%s575] sm:$0xf]
    %v577 = vld [vmem:[%s575 + $0x4] sm:$0xf]
    %v578 = vld [vmem:[%s575 + $0x8] sm:$0xf]
    %v579 = vld [vmem:[%s575 + $0xc] sm:$0xf]
    %v580 = vld [vmem:[%s575 + $0x10] sm:$0xf]
    %v581 = vld [vmem:[%s575 + $0x14] sm:$0xf]
    %v582 = vld [vmem:[%s575 + $0x18] sm:$0xf]
    %v583 = vld [vmem:[%s575 + $0x1c] sm:$0xf]
    %v584 = vld [vmem:[%s575 + $0x20] sm:$0xf]
    %v585 = vld [vmem:[%s575 + $0x24] sm:$0xf]
    %v586 = vld [vmem:[%s575 + $0x28] sm:$0xf]
    %v587 = vld [vmem:[%s575 + $0x2c] sm:$0xf]
    %v588 = vld [vmem:[%s575 + $0x30] sm:$0xf]
    %v589 = vld [vmem:[%s575 + $0x34] sm:$0xf]
    %v590 = vld [vmem:[%s575 + $0x38] sm:$0xf]
    %v591 = vld [vmem:[%s575 + $0x3c] sm:$0xf]
    %v592 = vld [vmem:[#allocation7 + $0x4] sm:$0x1]
    %v593 = vlaneseq
    %v594 = vshrl.u32 %v593, 7
    %v595 = vsub.s32 0, %v594
    %v596 = vrot.slane %v592, %v595
    %v613 = vunpack.c.l.b16 %v576
    %v614 = vunpack.c.l.b16 %v577
    %v615 = vunpack.c.l.b16 %v578
    %v616 = vunpack.c.l.b16 %v579
    %v617 = vunpack.c.l.b16 %v580
    %v618 = vunpack.c.l.b16 %v581
    %v619 = vunpack.c.l.b16 %v582
    %v620 = vunpack.c.l.b16 %v583
    %v621 = vunpack.c.l.b16 %v584
    %v622 = vunpack.c.l.b16 %v585
    %v623 = vunpack.c.l.b16 %v586
    %v624 = vunpack.c.l.b16 %v587
    %v625 = vunpack.c.l.b16 %v588
    %v626 = vunpack.c.l.b16 %v589
    %v627 = vunpack.c.l.b16 %v590
    %v628 = vunpack.c.l.b16 %v591
    %v629 = vpack.c.b16 %v614, %v613
    %v630 = vpack.c.b16 %v616, %v615
    %v631 = vpack.c.b16 %v618, %v617
    %v632 = vpack.c.b16 %v620, %v619
    %v633 = vpack.c.b16 %v622, %v621
    %v634 = vpack.c.b16 %v624, %v623
    %v635 = vpack.c.b16 %v626, %v625
    %v636 = vpack.c.b16 %v628, %v627
    %645 = vmatprep.subr.bf16.mxu0 0
    %646 = vmatpush1.bf16.msra.mxu0 %v636
    %647 = vmatprep.subr.bf16.mxu0 0
    %648 = vmatpush1.bf16.msra.mxu0 %v635
    %649 = vmatprep.subr.bf16.mxu0 0
    %650 = vmatpush1.bf16.msra.mxu0 %v634
    %651 = vmatprep.subr.bf16.mxu0 0
    %652 = vmatpush1.bf16.msra.mxu0 %v633
    %653 = vmatprep.subr.bf16.mxu0 0
    %654 = vmatpush1.bf16.msra.mxu0 %v632
    %655 = vmatprep.subr.bf16.mxu0 0
    %656 = vmatpush1.bf16.msra.mxu0 %v631
    %657 = vmatprep.subr.bf16.mxu0 0
    %658 = vmatpush1.bf16.msra.mxu0 %v630
    %659 = vmatprep.subr.bf16.mxu0 0
    %660 = vmatpush1.bf16.msra.mxu0 %v629
    %661 = vmatprep.subr.bf16.mxu0 0
    %662 = vmatpush2.bf16.msra.mxu0 0
    %663 = vmatprep.subr.bf16.mxu0 0
    %664 = vmatpush2.bf16.msra.mxu0 0
    %665 = vmatprep.subr.bf16.mxu0 0
    %666 = vmatpush2.bf16.msra.mxu0 0
    %667 = vmatprep.subr.bf16.mxu0 0
    %668 = vmatpush2.bf16.msra.mxu0 0
    %669 = vmatprep.subr.bf16.mxu0 0
    %670 = vmatpush2.bf16.msra.mxu0 0
    %671 = vmatprep.subr.bf16.mxu0 0
    %672 = vmatpush2.bf16.msra.mxu0 0
    %673 = vmatprep.subr.bf16.mxu0 0
    %674 = vmatpush2.bf16.msra.mxu0 0
    %675 = vmatprep.subr.bf16.mxu0 0
    %676 = vmatpush2.bf16.msra.mxu0 0
    %677 = vmatprep.mubr.bf16.mxu0 0
    %678 = vmatmul.mubr.bf16.gmra.mxu0 %v574
    %v679 = vpop.f32.mrf.mxu0
    %v680 = vadd.f32 %v596, %v679
    %v681 = vpop.f32.mrf.mxu0
    %v682 = vpop.f32.mrf.mxu0
    %v683 = vpop.f32.mrf.mxu0
    %684 = vdwg.mxu0
    %v685 = vmax.f32 %v680, 0.0
    %v686 = vpack.c.bf16 %v685, %v685
    %s687 = scalar_lea.vmem [#allocation5], 320
    %v688 = vld [vmem:[%s687] sm:$0xf]
    %v689 = vld [vmem:[%s687 + $0x4] sm:$0xf]
    %v690 = vld [vmem:[%s687 + $0x8] sm:$0xf]
    %v691 = vld [vmem:[%s687 + $0xc] sm:$0xf]
    %v692 = vld [vmem:[%s687 + $0x10] sm:$0xf]
    %v693 = vld [vmem:[%s687 + $0x14] sm:$0xf]
    %v694 = vld [vmem:[%s687 + $0x18] sm:$0xf]
    %v695 = vld [vmem:[%s687 + $0x1c] sm:$0xf]
    %v696 = vld [vmem:[%s687 + $0x20] sm:$0xf]
    %v697 = vld [vmem:[%s687 + $0x24] sm:$0xf]
    %v698 = vld [vmem:[%s687 + $0x28] sm:$0xf]
    %v699 = vld [vmem:[%s687 + $0x2c] sm:$0xf]
    %v700 = vld [vmem:[%s687 + $0x30] sm:$0xf]
    %v701 = vld [vmem:[%s687 + $0x34] sm:$0xf]
    %v702 = vld [vmem:[%s687 + $0x38] sm:$0xf]
    %v703 = vld [vmem:[%s687 + $0x3c] sm:$0xf]
    %v704 = vld [vmem:[#allocation7 + $0x5] sm:$0x1]
    %v705 = vlaneseq
    %v706 = vshrl.u32 %v705, 7
    %v707 = vsub.s32 0, %v706
    %v708 = vrot.slane %v704, %v707
    %v725 = vunpack.c.l.b16 %v688
    %v726 = vunpack.c.l.b16 %v689
    %v727 = vunpack.c.l.b16 %v690
    %v728 = vunpack.c.l.b16 %v691
    %v729 = vunpack.c.l.b16 %v692
    %v730 = vunpack.c.l.b16 %v693
    %v731 = vunpack.c.l.b16 %v694
    %v732 = vunpack.c.l.b16 %v695
    %v733 = vunpack.c.l.b16 %v696
    %v734 = vunpack.c.l.b16 %v697
    %v735 = vunpack.c.l.b16 %v698
    %v736 = vunpack.c.l.b16 %v699
    %v737 = vunpack.c.l.b16 %v700
    %v738 = vunpack.c.l.b16 %v701
    %v739 = vunpack.c.l.b16 %v702
    %v740 = vunpack.c.l.b16 %v703
    %v741 = vpack.c.b16 %v726, %v725
    %v742 = vpack.c.b16 %v728, %v727
    %v743 = vpack.c.b16 %v730, %v729
    %v744 = vpack.c.b16 %v732, %v731
    %v745 = vpack.c.b16 %v734, %v733
    %v746 = vpack.c.b16 %v736, %v735
    %v747 = vpack.c.b16 %v738, %v737
    %v748 = vpack.c.b16 %v740, %v739
    %757 = vmatprep.subr.bf16.mxu0 0
    %758 = vmatpush1.bf16.msra.mxu0 %v748
    %759 = vmatprep.subr.bf16.mxu0 0
    %760 = vmatpush1.bf16.msra.mxu0 %v747
    %761 = vmatprep.subr.bf16.mxu0 0
    %762 = vmatpush1.bf16.msra.mxu0 %v746
    %763 = vmatprep.subr.bf16.mxu0 0
    %764 = vmatpush1.bf16.msra.mxu0 %v745
    %765 = vmatprep.subr.bf16.mxu0 0
    %766 = vmatpush1.bf16.msra.mxu0 %v744
    %767 = vmatprep.subr.bf16.mxu0 0
    %768 = vmatpush1.bf16.msra.mxu0 %v743
    %769 = vmatprep.subr.bf16.mxu0 0
    %770 = vmatpush1.bf16.msra.mxu0 %v742
    %771 = vmatprep.subr.bf16.mxu0 0
    %772 = vmatpush1.bf16.msra.mxu0 %v741
    %773 = vmatprep.subr.bf16.mxu0 0
    %774 = vmatpush2.bf16.msra.mxu0 0
    %775 = vmatprep.subr.bf16.mxu0 0
    %776 = vmatpush2.bf16.msra.mxu0 0
    %777 = vmatprep.subr.bf16.mxu0 0
    %778 = vmatpush2.bf16.msra.mxu0 0
    %779 = vmatprep.subr.bf16.mxu0 0
    %780 = vmatpush2.bf16.msra.mxu0 0
    %781 = vmatprep.subr.bf16.mxu0 0
    %782 = vmatpush2.bf16.msra.mxu0 0
    %783 = vmatprep.subr.bf16.mxu0 0
    %784 = vmatpush2.bf16.msra.mxu0 0
    %785 = vmatprep.subr.bf16.mxu0 0
    %786 = vmatpush2.bf16.msra.mxu0 0
    %787 = vmatprep.subr.bf16.mxu0 0
    %788 = vmatpush2.bf16.msra.mxu0 0
    %789 = vmatprep.mubr.bf16.mxu0 0
    %790 = vmatmul.mubr.bf16.gmra.mxu0 %v686
    %v791 = vpop.f32.mrf.mxu0
    %v792 = vadd.f32 %v708, %v791
    %v793 = vpop.f32.mrf.mxu0
    %v794 = vpop.f32.mrf.mxu0
    %v795 = vpop.f32.mrf.mxu0
    %796 = vdwg.mxu0
    %v797 = vmax.f32 %v792, 0.0
    %v798 = vpack.c.bf16 %v797, %v797
    %s799 = scalar_lea.vmem [#allocation5], 384
    %v800 = vld [vmem:[%s799] sm:$0xf]
    %v801 = vld [vmem:[%s799 + $0x4] sm:$0xf]
    %v802 = vld [vmem:[%s799 + $0x8] sm:$0xf]
    %v803 = vld [vmem:[%s799 + $0xc] sm:$0xf]
    %v804 = vld [vmem:[%s799 + $0x10] sm:$0xf]
    %v805 = vld [vmem:[%s799 + $0x14] sm:$0xf]
    %v806 = vld [vmem:[%s799 + $0x18] sm:$0xf]
    %v807 = vld [vmem:[%s799 + $0x1c] sm:$0xf]
    %v808 = vld [vmem:[%s799 + $0x20] sm:$0xf]
    %v809 = vld [vmem:[%s799 + $0x24] sm:$0xf]
    %v810 = vld [vmem:[%s799 + $0x28] sm:$0xf]
    %v811 = vld [vmem:[%s799 + $0x2c] sm:$0xf]
    %v812 = vld [vmem:[%s799 + $0x30] sm:$0xf]
    %v813 = vld [vmem:[%s799 + $0x34] sm:$0xf]
    %v814 = vld [vmem:[%s799 + $0x38] sm:$0xf]
    %v815 = vld [vmem:[%s799 + $0x3c] sm:$0xf]
    %v816 = vld [vmem:[#allocation7 + $0x6] sm:$0x1]
    %v817 = vlaneseq
    %v818 = vshrl.u32 %v817, 7
    %v819 = vsub.s32 0, %v818
    %v820 = vrot.slane %v816, %v819
    %v837 = vunpack.c.l.b16 %v800
    %v838 = vunpack.c.l.b16 %v801
    %v839 = vunpack.c.l.b16 %v802
    %v840 = vunpack.c.l.b16 %v803
    %v841 = vunpack.c.l.b16 %v804
    %v842 = vunpack.c.l.b16 %v805
    %v843 = vunpack.c.l.b16 %v806
    %v844 = vunpack.c.l.b16 %v807
    %v845 = vunpack.c.l.b16 %v808
    %v846 = vunpack.c.l.b16 %v809
    %v847 = vunpack.c.l.b16 %v810
    %v848 = vunpack.c.l.b16 %v811
    %v849 = vunpack.c.l.b16 %v812
    %v850 = vunpack.c.l.b16 %v813
    %v851 = vunpack.c.l.b16 %v814
    %v852 = vunpack.c.l.b16 %v815
    %v853 = vpack.c.b16 %v838, %v837
    %v854 = vpack.c.b16 %v840, %v839
    %v855 = vpack.c.b16 %v842, %v841
    %v856 = vpack.c.b16 %v844, %v843
    %v857 = vpack.c.b16 %v846, %v845
    %v858 = vpack.c.b16 %v848, %v847
    %v859 = vpack.c.b16 %v850, %v849
    %v860 = vpack.c.b16 %v852, %v851
    %869 = vmatprep.subr.bf16.mxu0 0
    %870 = vmatpush1.bf16.msra.mxu0 %v860
    %871 = vmatprep.subr.bf16.mxu0 0
    %872 = vmatpush1.bf16.msra.mxu0 %v859
    %873 = vmatprep.subr.bf16.mxu0 0
    %874 = vmatpush1.bf16.msra.mxu0 %v858
    %875 = vmatprep.subr.bf16.mxu0 0
    %876 = vmatpush1.bf16.msra.mxu0 %v857
    %877 = vmatprep.subr.bf16.mxu0 0
    %878 = vmatpush1.bf16.msra.mxu0 %v856
    %879 = vmatprep.subr.bf16.mxu0 0
    %880 = vmatpush1.bf16.msra.mxu0 %v855
    %881 = vmatprep.subr.bf16.mxu0 0
    %882 = vmatpush1.bf16.msra.mxu0 %v854
    %883 = vmatprep.subr.bf16.mxu0 0
    %884 = vmatpush1.bf16.msra.mxu0 %v853
    %885 = vmatprep.subr.bf16.mxu0 0
    %886 = vmatpush2.bf16.msra.mxu0 0
    %887 = vmatprep.subr.bf16.mxu0 0
    %888 = vmatpush2.bf16.msra.mxu0 0
    %889 = vmatprep.subr.bf16.mxu0 0
    %890 = vmatpush2.bf16.msra.mxu0 0
    %891 = vmatprep.subr.bf16.mxu0 0
    %892 = vmatpush2.bf16.msra.mxu0 0
    %893 = vmatprep.subr.bf16.mxu0 0
    %894 = vmatpush2.bf16.msra.mxu0 0
    %895 = vmatprep.subr.bf16.mxu0 0
    %896 = vmatpush2.bf16.msra.mxu0 0
    %897 = vmatprep.subr.bf16.mxu0 0
    %898 = vmatpush2.bf16.msra.mxu0 0
    %899 = vmatprep.subr.bf16.mxu0 0
    %900 = vmatpush2.bf16.msra.mxu0 0
    %901 = vmatprep.mubr.bf16.mxu0 0
    %902 = vmatmul.mubr.bf16.gmra.mxu0 %v798
    %v903 = vpop.f32.mrf.mxu0
    %v904 = vadd.f32 %v820, %v903
    %v905 = vpop.f32.mrf.mxu0
    %v906 = vpop.f32.mrf.mxu0
    %v907 = vpop.f32.mrf.mxu0
    %908 = vdwg.mxu0
    %909 = vst [vmem:[#allocation10] sm:$0xff] %v904
    // Predicated region
    $region34: #{tpu_custom_call.1} parent=1 // pred_check
      _
    $region35: #{tpu_custom_call.1} parent=1 // pred_check_branch
      %911 = sbr.rel (0) target = $region37
    $region36: #{tpu_custom_call.1} parent=1 // pred_region
      %s913 = ssub.s32 128, 128
      %914 = vsyncadd [#allocation4], %s913
      %s916 = sshll.u32 [#allocation10], 4
      %s917 = int_to_ptr.vmem [resolvable:$true] %s916
      %919 = dma.vmem_to_hbm [thread:$0]  %s917, 128, %s4, [#allocation4]
    $region37: #{tpu_custom_call.1} parent=1 // pred_fallthru
      _
    // Predicated region
    $region38: #{tpu_custom_call.1} parent=1 // pred_check
      _
    $region39: #{tpu_custom_call.1} parent=1 // pred_check_branch
      %921 = sbr.rel (0) target = $region41
    $region40: #{tpu_custom_call.1} parent=1 // pred_region
      %922 = dma.done [#allocation4], 128
    $region41: #{tpu_custom_call.1} parent=1 // pred_fallthru
      _
    %923 = vsyncpa [#allocation3], 1
    %924 = vsyncpa [#allocation6], 1
    %925 = vsyncpa [#allocation9], 1
    %926 = vsyncpa [#allocation4], 1

</llo_original>
